<compile_context>
chip_gen: v7x
topology: tpu7x:2x2x1
jax: 0.10.0
libtpu: 0.0.40
codegen_flags: <defaults>
</compile_context>

<pallas_src>
import jax
import jax.numpy as jnp
from jax.experimental import pallas as pl
from jax.experimental.pallas import tpu as pltpu


def _patch_embed_kernel(x_ref, w_ref, b_ref, o_ref):
    # x_ref: (TM, K)  lane-dense patch rows, K = C*P
    # w_ref: (K, E)   flattened conv weight, VMEM-resident across all tiles
    # b_ref: (1, E)   bias (broadcast over rows)
    # o_ref: (TM, E)
    acc = jnp.dot(x_ref[...], w_ref[...], preferred_element_type=jnp.float32)
    o_ref[...] = (acc + b_ref[...]).astype(o_ref.dtype)


def _round_up(v, m):
    return ((v + m - 1) // m) * m


def _select_tile(M, E, K):
    """Pick row-tile size TM (multiple of 8 unless TM == M) + VMEM estimate."""
    Ep = _round_up(E, 128)   # lane-padded widths as they sit in VMEM
    Kp = _round_up(K, 128)

    def working_set_bytes(tm):
        # double-buffered output + x blocks, (conservatively) double-buffered
        # resident weight, plus bias.
        return 4 * (2 * tm * Ep + 2 * tm * Kp + 2 * Kp * Ep + 2 * Ep)

    if M <= 8:
        return M, working_set_bytes(M)

    # Target ~2 MiB output blocks; 512 rows as a floor for very large E.
    TM = max(512, (2 << 20) // (4 * Ep))
    # Guarantee >= 2 grid tiles so a v7x megacore shards work on both TCs.
    TM = min(TM, max(8, M // 2))
    TM = min(TM, M)
    if TM < M:
        TM = max(8, (TM // 8) * 8)

    # Keep the pipelined working set well under the smallest VMEM part
    # (v7x: 64 MiB physical / 32 MiB default scoped).
    budget = 24 << 20
    while TM > 8 and working_set_bytes(TM) > budget:
        TM = max(8, ((TM // 2) // 8) * 8)
    return TM, working_set_bytes(TM)


def patch_embed_1d(x, weight, bias, patch_size):
    """Forward pass of PatchEmbed1D.

    Args:
      x:      (B, C_in, L) float32, PyTorch NCW layout.
      weight: (embed_dim, C_in, patch_size)  -- nn.Conv1d weight layout.
      bias:   (embed_dim,)
      patch_size: int, kernel_size == stride of the conv.

    Returns:
      (B, num_patches, embed_dim)
    """
    B, C, L = x.shape
    E, Cw, P = weight.shape
    assert Cw == C and P == patch_size
    N = L // P          # num_patches (trailing remainder dropped, like Conv1d)
    M = B * N           # total patch rows
    K = C * P           # fused contraction depth

    # Lay patches out as lane-dense rows (M, K).  One transpose pass over the
    # input -- a few percent of the (dominant) output traffic at realistic
    # embed dims -- in exchange for a single fused-K MXU matmul per tile and
    # a lane-dense LHS in VMEM.
    x_rows = jnp.transpose(
        x[:, :, : N * P].reshape(B, C, N, P), (0, 2, 1, 3)).reshape(M, K)

    # (E, C, P) -> (K, E).  Weight and bias are tiny and stay VMEM-resident
    # (constant block index below).
    w2 = jnp.transpose(weight, (1, 2, 0)).reshape(K, E)
    b_row = bias.reshape(1, E)

    TM, ws_bytes = _select_tile(M, E, K)
    grid = (pl.cdiv(M, TM),)

    # Raise the scoped VMEM limit where needed (v5e default is only 16 MiB),
    # with headroom, but stay comfortably below v7x's 64 MiB physical VMEM.
    vmem_limit = int(min(48 << 20, max(ws_bytes + (8 << 20), 32 << 20)))

    cost = pl.CostEstimate(
        flops=2 * M * K * E,
        transcendentals=0,
        bytes_accessed=4 * (M * K + K * E + E + M * E),
    )

    out = pl.pallas_call(
        _patch_embed_kernel,
        out_shape=jax.ShapeDtypeStruct((M, E), x.dtype),
        grid=grid,
        in_specs=[
            # x rows: tiled along the (parallel) row axis.
            pl.BlockSpec((TM, K), lambda i: (i, 0)),
            # weight / bias: constant block index -> DMA'd once, resident.
            pl.BlockSpec((K, E), lambda i: (0, 0)),
            pl.BlockSpec((1, E), lambda i: (0, 0)),
        ],
        # True-E output: no pad-to-128 + slice pass; lane-dense when E%128==0.
        out_specs=pl.BlockSpec((TM, E), lambda i: (i, 0)),
        compiler_params=pltpu.CompilerParams(
            dimension_semantics=("parallel",),
            vmem_limit_bytes=vmem_limit,
        ),
        cost_estimate=cost,
    )(x_rows, w2, b_row)

    # Contiguous reshape back to (B, num_patches, embed_dim) -- free.
    return out.reshape(B, N, E)


def _reference(x, weight, bias, patch_size):
    """Pure-JAX reference: Conv1d(stride=kernel) + transpose(1, 2)."""
    B, C, L = x.shape
    E, _, P = weight.shape
    N = L // P
    xp = x[:, :, : N * P].reshape(B, C, N, P)
    return jnp.einsum("bcnk,eck->bne", xp, weight) + bias[None, None, :]


def _run_case(key, B, in_chans, seq_length, patch_size, embed_dim):
    kx, kw, kb = jax.random.split(key, 3)
    x = jax.random.normal(kx, (B, in_chans, seq_length), dtype=jnp.float32)
    weight = 0.02 * jax.random.normal(
        kw, (embed_dim, in_chans, patch_size), dtype=jnp.float32)
    bias = 0.01 * jax.random.normal(kb, (embed_dim,), dtype=jnp.float32)

    out = patch_embed_1d(x, weight, bias, patch_size)
    out = jax.block_until_ready(out)

    ref = _reference(x, weight, bias, patch_size)
    n = seq_length // patch_size
    assert out.shape == (B, n, embed_dim), out.shape
    max_err = float(jnp.max(jnp.abs(out - ref)))
    assert jnp.allclose(out, ref, atol=1e-5, rtol=1e-5), max_err


if __name__ == "__main__":
    key = jax.random.PRNGKey(0)
    k1, k2, k3 = jax.random.split(key, 3)

    # Module-default-like small shape (in_chans=2, patch=16): single tile,
    # embed_dim < 128 exercising the direct (masked-lane) output path.
    _run_case(k1, B=2, in_chans=2, seq_length=64, patch_size=16, embed_dim=32)

    # Multi-tile grid, lane-dense embed_dim (no masking at all).
    _run_case(k2, B=2, in_chans=2, seq_length=2048, patch_size=16,
              embed_dim=128)

    # B=1 (megacore >=2-tile cap), L % P != 0 (remainder dropped),
    # M % TM != 0 (partial final tile), embed_dim=192 (>=128, not a multiple
    # of 128).
    _run_case(k3, B=1, in_chans=2, seq_length=2085, patch_size=16,
              embed_dim=192)

    print("KERNEL_OK")
</pallas_src>

<mosaic_0001>
module attributes {stable_mosaic.version = 11 : i64} {
  func.func @_patch_embed_kernel(%arg0: i32, %arg1: memref<8x32xf32, #tpu.memory_space<vmem>>, %arg2: memref<32x32xf32, #tpu.memory_space<vmem>>, %arg3: memref<1x32xf32, #tpu.memory_space<vmem>>, %arg4: memref<8x32xf32, #tpu.memory_space<vmem>>) attributes {dimension_semantics = [#tpu.dimension_semantics<parallel>], iteration_bounds = array<i64: 1>, scalar_prefetch = 0 : i64, scratch_operands = 0 : i64, tpu.core_type = #tpu.core_type<tc>, window_params = [{transform_indices = @transform_0, window_bounds = array<i64: 8, 32>}, {pipeline_mode = #tpu.pipeline_mode<synchronous>, transform_indices = @transform_1, window_bounds = array<i64: 32, 32>}, {pipeline_mode = #tpu.pipeline_mode<synchronous>, transform_indices = @transform_2, window_bounds = array<i64: 1, 32>}, {transform_indices = @transform_3, window_bounds = array<i64: 8, 32>}]} {
    %c0 = arith.constant 0 : index
    %c0_0 = arith.constant 0 : index
    %0 = vector.load %arg1[%c0, %c0_0] : memref<8x32xf32, #tpu.memory_space<vmem>>, vector<8x32xf32>
    %c0_1 = arith.constant 0 : index
    %c0_2 = arith.constant 0 : index
    %1 = vector.load %arg2[%c0_1, %c0_2] : memref<32x32xf32, #tpu.memory_space<vmem>>, vector<32x32xf32>
    %cst = arith.constant dense<0.000000e+00> : vector<8x32xf32>
    %2 = tpu.matmul %0, %1, %cst {dimension_numbers = #tpu.dot_dimension_numbers<[1], [0], [0], [1], [0, 0, 1, 1], [], []>} : vector<8x32xf32>, vector<32x32xf32>, vector<8x32xf32> -> vector<8x32xf32>
    %c0_3 = arith.constant 0 : index
    %c0_4 = arith.constant 0 : index
    %3 = vector.load %arg3[%c0_3, %c0_4] : memref<1x32xf32, #tpu.memory_space<vmem>>, vector<1x32xf32>
    %4 = vector.broadcast %3 : vector<1x32xf32> to vector<8x32xf32>
    %5 = arith.addf %2, %4 : vector<8x32xf32>
    %c0_5 = arith.constant 0 : index
    %c0_6 = arith.constant 0 : index
    %6 = vector.load %arg4[%c0_5, %c0_6] : memref<8x32xf32, #tpu.memory_space<vmem>>, vector<8x32xf32>
    tpu.vector_store %arg4[%c0_5, %c0_6], %5 {strides = array<i32>} : memref<8x32xf32, #tpu.memory_space<vmem>>, vector<8x32xf32>,
    return
  }
  func.func @transform_0(%arg0: i32) -> (i32, i32) {
    %c0_i32 = arith.constant 0 : i32
    %c0_i32_0 = arith.constant 0 : i32
    return %arg0, %c0_i32 : i32, i32
  }
  func.func @transform_1(%arg0: i32) -> (i32, i32) {
    %c0_i32 = arith.constant 0 : i32
    %c0_i32_0 = arith.constant 0 : i32
    %c0_i32_1 = arith.constant 0 : i32
    return %c0_i32, %c0_i32_0 : i32, i32
  }
  func.func @transform_2(%arg0: i32) -> (i32, i32) {
    %c0_i32 = arith.constant 0 : i32
    %c0_i32_0 = arith.constant 0 : i32
    %c0_i32_1 = arith.constant 0 : i32
    return %c0_i32, %c0_i32_0 : i32, i32
  }
  func.func @transform_3(%arg0: i32) -> (i32, i32) {
    %c0_i32 = arith.constant 0 : i32
    %c0_i32_0 = arith.constant 0 : i32
    return %arg0, %c0_i32 : i32, i32
  }
}

</mosaic_0001>

<llo_original>
// kernel: tpu_custom_call.1
$region0: #{tpu_custom_call.1}
  #allocation0 [shape = 'u32[]', space=smem, size = 0x4, offset = 0x4, fixed_abs, tag = 'smem constant byte address 0x4 - core index']
  #allocation1 [shape = 'u32[144,128]{1,0:T(1,128)}', space=vmem, size = 0x12000, scoped, tag = 'internal scratch']
  %s0 = inlined_call_operand.hbm [shape: f32[8,32], index: 0, kind: input, shape index: {}]
  %s1 = inlined_call_operand.hbm [shape: f32[32,32], index: 1, kind: input, shape index: {}]
  %s2 = inlined_call_operand.vmem [shape: f32[1,32], index: 2, kind: input, shape index: {}]
  %s3 = inlined_call_operand.hbm [shape: f32[8,32], index: 3, kind: output, shape index: {}]
  %s4 = sld [smem:[#allocation0]]
  $region30: #{tpu_custom_call.1} parent=0
    _
  %s6 = ssub.s32 1, %s4
  %s7 = scalar_select 0, %s6, %s4
  $region1: #{tpu_custom_call.1} parent=0
    #allocation2 [shape = 'u8[4096]{0}', space=vmem, size = 0x1000, scoped, tag = 'input window, operand 0, single buffered']
    #allocation3 [shape = 's32[1]{0}', space=sflag, size = 0x4, scoped, tag = 'scoped memory for tpu_custom_call.1']
    #allocation4 [shape = 's32[1]{0}', space=sflag, size = 0x4, scoped, tag = 'scoped memory for tpu_custom_call.1']
    #allocation5 [shape = 'u8[16384]{0}', space=vmem, size = 0x4000, scoped, tag = 'input window, operand 1, single buffered']
    #allocation6 [shape = 's32[1]{0}', space=sflag, size = 0x4, scoped, tag = 'scoped memory for tpu_custom_call.1']
    #allocation7 [shape = 'u8[4096]{0}', space=vmem, size = 0x1000, scoped, tag = 'output window, operand 0, single buffered']
    %8 = vsyncpa [#allocation3], 0
    %9 = vsyncpa [#allocation6], 0
    %10 = vsyncpa [#allocation4], 0
    // Predicated region
    $region2: #{tpu_custom_call.1} parent=1 // pred_check
      _
    $region3: #{tpu_custom_call.1} parent=1 // pred_check_branch
      %12 = sbr.rel (0) target = $region5
    $region4: #{tpu_custom_call.1} parent=1 // pred_region
      %s14 = ssub.s32 128, 128
      %15 = vsyncadd [#allocation3], %s14
      %s17 = sshll.u32 [#allocation2], 4
      %s18 = int_to_ptr.vmem [resolvable:$true] %s17
      %20 = dma.hbm_to_vmem [thread:$0]  %s0, 128, %s18, [#allocation3]
    $region5: #{tpu_custom_call.1} parent=1 // pred_fallthru
      _
    // Predicated region
    $region6: #{tpu_custom_call.1} parent=1 // pred_check
      _
    $region7: #{tpu_custom_call.1} parent=1 // pred_check_branch
      %22 = sbr.rel (0) target = $region9
    $region8: #{tpu_custom_call.1} parent=1 // pred_region
      %s24 = ssub.s32 512, 512
      %25 = vsyncadd [#allocation6], %s24
      %s26 = sshll.u32 [#allocation5], 4
      %s27 = int_to_ptr.vmem [resolvable:$true] %s26
      %32 = dma.hbm_to_vmem [thread:$0]  %s1, 512, %s27, [#allocation6], 128, 128, 8
    $region9: #{tpu_custom_call.1} parent=1 // pred_fallthru
      _
    // Predicated region
    $region10: #{tpu_custom_call.1} parent=1 // pred_check
      _
    $region11: #{tpu_custom_call.1} parent=1 // pred_check_branch
      %34 = sbr.rel (0) target = $region13
    $region12: #{tpu_custom_call.1} parent=1 // pred_region
      _
    $region13: #{tpu_custom_call.1} parent=1 // pred_fallthru
      _
    // Predicated region
    $region14: #{tpu_custom_call.1} parent=1 // pred_check
      _
    $region15: #{tpu_custom_call.1} parent=1 // pred_check_branch
      %36 = sbr.rel (0) target = $region17
    $region16: #{tpu_custom_call.1} parent=1 // pred_region
      %37 = dma.done [#allocation3], 128
    $region17: #{tpu_custom_call.1} parent=1 // pred_fallthru
      _
    // Predicated region
    $region18: #{tpu_custom_call.1} parent=1 // pred_check
      _
    $region19: #{tpu_custom_call.1} parent=1 // pred_check_branch
      %39 = sbr.rel (0) target = $region21
    $region20: #{tpu_custom_call.1} parent=1 // pred_region
      %40 = dma.done [#allocation6], 512
    $region21: #{tpu_custom_call.1} parent=1 // pred_fallthru
      _
    %v41 = vld [vmem:[#allocation2] sm:$0xff]
    %v42 = vld [vmem:[#allocation5] sm:$0xff]
    %v43 = vld [vmem:[#allocation5 + $0x8] sm:$0xff]
    %v44 = vld [vmem:[#allocation5 + $0x10] sm:$0xff]
    %v45 = vld [vmem:[#allocation5 + $0x18] sm:$0xff]
    %v46 = vld [vmem:[%s2] sm:$0x1]
    %v48 = vlaneseq
    %v49 = vshrl.u32 %v48, 7
    %v50 = vsub.s32 0, %v49
    %v51 = vrot.slane %v46, %v50
    %vm53 = vcmask 261120
    %v55 = vsel %vm53, %v41, 0
    %57 = vmatprep.subr.mxu0 0.0
    %58 = vmatpush1.msra.mxu0 %v42
    %59 = vmatprep.subr.mxu0 0.0
    %60 = vmatpush1.msra.mxu0 %v43
    %61 = vmatprep.subr.mxu0 0.0
    %62 = vmatpush1.msra.mxu0 %v44
    %63 = vmatprep.subr.mxu0 0.0
    %64 = vmatpush1.msra.mxu0 %v45
    %65 = vmatprep.subr.mxu0 0.0
    %66 = vmatpush1.msra.mxu0 0.0
    %67 = vmatprep.subr.mxu0 0.0
    %68 = vmatpush1.msra.mxu0 0.0
    %69 = vmatprep.subr.mxu0 0.0
    %70 = vmatpush1.msra.mxu0 0.0
    %71 = vmatprep.subr.mxu0 0.0
    %72 = vmatpush1.msra.mxu0 0.0
    %73 = vmatprep.subr.mxu0 0.0
    %74 = vmatpush1.msra.mxu0 0.0
    %75 = vmatprep.subr.mxu0 0.0
    %76 = vmatpush1.msra.mxu0 0.0
    %77 = vmatprep.subr.mxu0 0.0
    %78 = vmatpush1.msra.mxu0 0.0
    %79 = vmatprep.subr.mxu0 0.0
    %80 = vmatpush1.msra.mxu0 0.0
    %81 = vmatprep.subr.mxu0 0.0
    %82 = vmatpush1.msra.mxu0 0.0
    %83 = vmatprep.subr.mxu0 0.0
    %84 = vmatpush1.msra.mxu0 0.0
    %85 = vmatprep.subr.mxu0 0.0
    %86 = vmatpush1.msra.mxu0 0.0
    %87 = vmatprep.subr.mxu0 0.0
    %88 = vmatpush1.msra.mxu0 0.0
    %89 = vmatprep.subr.mxu0 0.0
    %90 = vmatpush1.msra.mxu0 0.0
    %91 = vmatprep.subr.mxu0 0.0
    %92 = vmatpush1.msra.mxu0 0.0
    %93 = vmatprep.subr.mxu0 0.0
    %94 = vmatpush1.msra.mxu0 0.0
    %95 = vmatprep.subr.mxu0 0.0
    %96 = vmatpush1.msra.mxu0 0.0
    %97 = vmatprep.subr.mxu0 0.0
    %98 = vmatpush1.msra.mxu0 0.0
    %99 = vmatprep.subr.mxu0 0.0
    %100 = vmatpush1.msra.mxu0 0.0
    %101 = vmatprep.subr.mxu0 0.0
    %102 = vmatpush1.msra.mxu0 0.0
    %103 = vmatprep.subr.mxu0 0.0
    %104 = vmatpush1.msra.mxu0 0.0
    %105 = vmatprep.subr.mxu0 0.0
    %106 = vmatpush1.msra.mxu0 0.0
    %107 = vmatprep.subr.mxu0 0.0
    %108 = vmatpush1.msra.mxu0 0.0
    %109 = vmatprep.subr.mxu0 0.0
    %110 = vmatpush1.msra.mxu0 0.0
    %111 = vmatprep.subr.mxu0 0.0
    %112 = vmatpush1.msra.mxu0 0.0
    %113 = vmatprep.subr.mxu0 0.0
    %114 = vmatpush1.msra.mxu0 0.0
    %115 = vmatprep.subr.mxu0 0.0
    %116 = vmatpush1.msra.mxu0 0.0
    %117 = vmatprep.subr.mxu0 0.0
    %118 = vmatpush1.msra.mxu0 0.0
    %119 = vmatprep.subr.mxu0 0.0
    %120 = vmatpush1.msra.mxu0 0.0
    %121 = vmatprep.mubr.f32.mxu0 0.0
    %122 = vmatmul.mubr.f32.gmra.mrb[0].mxu0 %v55
    %v123 = vpop.f32.mrb[0].mxu0
    %v124 = vadd.f32 %v51, %v123
    %v125 = vpop.f32.mrb[0].mxu0
    %126 = vdwg.mxu0
    %127 = vst.msk [vmem:[#allocation7] sm:$0xff] %vm53, %v124
    // Predicated region
    $region22: #{tpu_custom_call.1} parent=1 // pred_check
      _
    $region23: #{tpu_custom_call.1} parent=1 // pred_check_branch
      %129 = sbr.rel (0) target = $region25
    $region24: #{tpu_custom_call.1} parent=1 // pred_region
      %s131 = ssub.s32 128, 128
      %132 = vsyncadd [#allocation4], %s131
      %s134 = sshll.u32 [#allocation7], 4
      %s135 = int_to_ptr.vmem [resolvable:$true] %s134
      %137 = dma.vmem_to_hbm [thread:$0]  %s135, 128, %s3, [#allocation4]
    $region25: #{tpu_custom_call.1} parent=1 // pred_fallthru
      _
    // Predicated region
    $region26: #{tpu_custom_call.1} parent=1 // pred_check
      _
    $region27: #{tpu_custom_call.1} parent=1 // pred_check_branch
      %139 = sbr.rel (0) target = $region29
    $region28: #{tpu_custom_call.1} parent=1 // pred_region
      %140 = dma.done [#allocation4], 128
    $region29: #{tpu_custom_call.1} parent=1 // pred_fallthru
      _
    %141 = vsyncpa [#allocation3], 1
    %142 = vsyncpa [#allocation6], 1
    %143 = vsyncpa [#allocation4], 1

</llo_original>
